<compile_context>
chip_gen: v5e
topology: v5e:2x2
jax: 0.10.0
libtpu: 0.0.40
codegen_flags: <defaults>
</compile_context>

<pallas_src>
import functools
import math

import jax
import jax.numpy as jnp
from jax.experimental import pallas as pl
from jax.experimental.pallas import tpu as pltpu


def _round_up(x, m):
    return ((x + m - 1) // m) * m


def _entrywise_u_kernel(x_ref, w_ref, o_ref):
    # x_ref: (tr, F*C_in)  lane-dense activation tile
    # w_ref: (F*C_in, F*C_out) resident folded block-diagonal weight
    # o_ref: (tr, F*C_out) lane-dense output tile (unmasked stores)
    o_ref[...] = jnp.dot(
        x_ref[...], w_ref[...], preferred_element_type=jnp.float32
    ).astype(o_ref.dtype)


def entrywise_u(u, conv_weight, groups, *, row_tile=512):
    """Grouped pointwise conv (Conv1d, kernel_size=1, bias=False), channels-last.

    u:           (N, L, C_in) activations.
    conv_weight: (C_out, C_in // groups, 1) PyTorch Conv1d weight.
    groups:      number of towers.
    row_tile:    max folded-row tile (tunable; clamped by a VMEM budget).

    Note: the weight is cast to u.dtype for the MXU; with bf16 activations this
    is slightly less precise than PyTorch's f32 weights (documented tradeoff).
    """
    N, L, c_in = u.shape
    c_out = conv_weight.shape[0]
    cig = c_in // groups
    cog = c_out // groups
    dtype = u.dtype
    dt_bytes = jnp.dtype(dtype).itemsize

    # ---- glue: dense block-diagonal weight (C_in, C_out), fully vectorized ----
    w = conv_weight[..., 0].reshape(groups, cog, cig)        # (G, cog, cig)
    blocks = jnp.transpose(w, (0, 2, 1))                     # (G, cig, cog)
    eye_g = jnp.eye(groups, dtype=conv_weight.dtype)
    w_dense = jnp.einsum("gh,gio->giho", eye_g, blocks).reshape(c_in, c_out)

    # ---- lane-fold factor F: folded widths become multiples of 128 ------------
    f_in = 128 // math.gcd(128, c_in)
    f_out = 128 // math.gcd(128, c_out)
    fold = f_in * f_out // math.gcd(f_in, f_out)
    # Keep the resident folded weight small; otherwise fall back to no folding
    # (block last-dims then equal the full array dims, which Pallas allows).
    if fold * c_in * fold * c_out * dt_bytes > 4 * 1024 * 1024:
        fold = 1
    w_in = fold * c_in
    w_out = fold * c_out

    if fold > 1:
        w_big = jnp.kron(jnp.eye(fold, dtype=w_dense.dtype), w_dense)
    else:
        w_big = w_dense
    w_big = w_big.astype(dtype)   # match activation dtype for the MXU

    # ---- row tiling, sized against VMEM (double-buffered in+out tiles) --------
    M = N * L
    R = pl.cdiv(M, fold)                          # folded rows
    per_row_bytes = (w_in + w_out) * dt_bytes
    # ~8 MiB for double-buffered activation tiles keeps v7x (64 MiB physical,
    # 32 MiB scoped default VMEM) comfortable while amortizing the ~0.35 us
    # per-grid-step overhead; shrink the tile instead of collapsing the grid
    # when the problem is small.
    max_tr = max(8, (8 * 1024 * 1024) // (2 * per_row_bytes))
    tr = min(row_tile, max_tr, _round_up(R, 8))
    tr = max(8, (tr // 8) * 8)

    r_pad = _round_up(R, tr)
    m_pad = r_pad * fold

    x = u.reshape(M, c_in)
    if m_pad != M:
        x = jnp.pad(x, ((0, m_pad - M), (0, 0)))
    x_f = x.reshape(r_pad, w_in)                  # lane-dense view, reshape only

    grid = (r_pad // tr,)
    vmem_need = 2 * (tr * (w_in + w_out) + w_in * w_out) * dt_bytes
    vmem_limit = int(min(max(2 * vmem_need, 16 * 1024 * 1024), 48 * 1024 * 1024))

    y_f = pl.pallas_call(
        _entrywise_u_kernel,
        out_shape=jax.ShapeDtypeStruct((r_pad, w_out), dtype),
        grid_spec=pltpu.PrefetchScalarGridSpec(
            num_scalar_prefetch=0,
            grid=grid,
            in_specs=[
                pl.BlockSpec((tr, w_in), lambda i: (i, 0)),
                pl.BlockSpec((w_in, w_out), lambda i: (0, 0)),  # resident weight
            ],
            out_specs=pl.BlockSpec((tr, w_out), lambda i: (i, 0)),
        ),
        compiler_params=pltpu.CompilerParams(
            dimension_semantics=("parallel",),   # megacore / v7x 2-TC sharding
            vmem_limit_bytes=vmem_limit,
        ),
    )(x_f, w_big)

    return y_f.reshape(m_pad, c_out)[:M].reshape(N, L, c_out)


def _reference(u, conv_weight, groups):
    """Pure-JAX reference matching torch.nn.Conv1d(kernel_size=1, groups, bias=False)."""
    N, L, c_in = u.shape
    c_out = conv_weight.shape[0]
    cig = c_in // groups
    cog = c_out // groups
    ug = u.reshape(N, L, groups, cig)                      # (N, L, G, cig)
    wg = conv_weight[..., 0].reshape(groups, cog, cig)     # (G, cog, cig)
    out = jnp.einsum("nlgi,goi->nlgo", ug, wg)             # (N, L, G, cog)
    return out.reshape(N, L, c_out)


if __name__ == "__main__":
    # Small shapes consistent with the module: u is N x colors x channels.
    N, colors = 2, 8
    in_features = 4
    out_features = 8
    num_towers = in_features  # PyTorch default: num_towers = in_features

    key = jax.random.PRNGKey(0)
    k_u, k_w = jax.random.split(key)
    u = jax.random.normal(k_u, (N, colors, in_features), dtype=jnp.float32)
    # Conv1d weight shape: (out_features, in_features // groups, kernel_size=1)
    conv_weight = jax.random.normal(
        k_w, (out_features, in_features // num_towers, 1), dtype=jnp.float32
    ) * 0.1

    fn = jax.jit(functools.partial(entrywise_u, groups=num_towers))
    out = jax.block_until_ready(fn(u, conv_weight))

    ref = _reference(u, conv_weight, num_towers)
    assert out.shape == (N, colors, out_features)
    assert jnp.allclose(out, ref, atol=1e-5, rtol=1e-5), "mismatch vs reference"

    print("KERNEL_OK")
</pallas_src>

<mosaic_0001>
module attributes {stable_mosaic.version = 11 : i64} {
  func.func @_entrywise_u_kernel(%arg0: i32, %arg1: memref<8x128xf32, #tpu.memory_space<vmem>>, %arg2: memref<128x256xf32, #tpu.memory_space<vmem>>, %arg3: memref<8x256xf32, #tpu.memory_space<vmem>>) attributes {dimension_semantics = [#tpu.dimension_semantics<parallel>], iteration_bounds = array<i64: 1>, scalar_prefetch = 0 : i64, scratch_operands = 0 : i64, tpu.core_type = #tpu.core_type<tc>, window_params = [{transform_indices = @transform_0, window_bounds = array<i64: 8, 128>}, {pipeline_mode = #tpu.pipeline_mode<synchronous>, transform_indices = @transform_1, window_bounds = array<i64: 128, 256>}, {transform_indices = @transform_2, window_bounds = array<i64: 8, 256>}]} {
    %c0 = arith.constant 0 : index
    %c0_0 = arith.constant 0 : index
    %0 = vector.load %arg1[%c0, %c0_0] : memref<8x128xf32, #tpu.memory_space<vmem>>, vector<8x128xf32>
    %c0_1 = arith.constant 0 : index
    %c0_2 = arith.constant 0 : index
    %1 = vector.load %arg2[%c0_1, %c0_2] : memref<128x256xf32, #tpu.memory_space<vmem>>, vector<128x256xf32>
    %cst = arith.constant dense<0.000000e+00> : vector<8x256xf32>
    %2 = tpu.matmul %0, %1, %cst {dimension_numbers = #tpu.dot_dimension_numbers<[1], [0], [0], [1], [0, 0, 1, 1], [], []>} : vector<8x128xf32>, vector<128x256xf32>, vector<8x256xf32> -> vector<8x256xf32>
    %c0_3 = arith.constant 0 : index
    %c0_4 = arith.constant 0 : index
    %3 = vector.load %arg3[%c0_3, %c0_4] : memref<8x256xf32, #tpu.memory_space<vmem>>, vector<8x256xf32>
    tpu.vector_store %arg3[%c0_3, %c0_4], %2 {strides = array<i32>} : memref<8x256xf32, #tpu.memory_space<vmem>>, vector<8x256xf32>,
    return
  }
  func.func @transform_0(%arg0: i32) -> (i32, i32) {
    %c0_i32 = arith.constant 0 : i32
    %c0_i32_0 = arith.constant 0 : i32
    return %arg0, %c0_i32 : i32, i32
  }
  func.func @transform_1(%arg0: i32) -> (i32, i32) {
    %c0_i32 = arith.constant 0 : i32
    %c0_i32_0 = arith.constant 0 : i32
    %c0_i32_1 = arith.constant 0 : i32
    return %c0_i32, %c0_i32_0 : i32, i32
  }
  func.func @transform_2(%arg0: i32) -> (i32, i32) {
    %c0_i32 = arith.constant 0 : i32
    %c0_i32_0 = arith.constant 0 : i32
    return %arg0, %c0_i32 : i32, i32
  }
}

</mosaic_0001>

<llo_original>
// kernel: entrywise_u.1
$region0: #{entrywise_u.1}
  #allocation0 [shape = 'u32[]', space=smem, size = 0x4, offset = 0x4, fixed_abs, tag = 'smem constant byte address 0x4 - core index']
  #allocation1 [shape = 'u32[72,128]{1,0:T(1,128)}', space=vmem, size = 0x9000, scoped, tag = 'internal scratch']
  %s0 = inlined_call_operand.vmem [shape: f32[8,128], index: 0, kind: input, shape index: {}]
  %s1 = inlined_call_operand.vmem [shape: f32[128,256], index: 1, kind: input, shape index: {}]
  %s2 = inlined_call_operand.vmem [shape: f32[8,256], index: 2, kind: output, shape index: {}]
  %s3 = sld [smem:[#allocation0]]
  $region18: #{entrywise_u.1} parent=0
    _
  %s5 = ssub.s32 1, %s3
  %s6 = scalar_select 0, %s5, %s3
  // Predicated region
  $region2: #{entrywise_u.1} parent=0 // pred_check
    _
  $region3: #{entrywise_u.1} parent=0 // pred_check_branch
    %8 = sbr.rel (0) target = $region5
  $region4: #{entrywise_u.1} parent=0 // pred_region
    _
  $region5: #{entrywise_u.1} parent=0 // pred_fallthru
    _
  // Predicated region
  $region6: #{entrywise_u.1} parent=0 // pred_check
    _
  $region7: #{entrywise_u.1} parent=0 // pred_check_branch
    %10 = sbr.rel (0) target = $region9
  $region8: #{entrywise_u.1} parent=0 // pred_region
    _
  $region9: #{entrywise_u.1} parent=0 // pred_fallthru
    _
  %v11 = vld [vmem:[%s0] sm:$0xff]
  %v12 = vld [vmem:[%s1] sm:$0xff]
  %v13 = vld [vmem:[%s1 + $0x8] sm:$0xff]
  %v14 = vld [vmem:[%s1 + $0x10] sm:$0xff]
  %v15 = vld [vmem:[%s1 + $0x18] sm:$0xff]
  %v16 = vld [vmem:[%s1 + $0x20] sm:$0xff]
  %v17 = vld [vmem:[%s1 + $0x28] sm:$0xff]
  %v18 = vld [vmem:[%s1 + $0x30] sm:$0xff]
  %v19 = vld [vmem:[%s1 + $0x38] sm:$0xff]
  %v20 = vld [vmem:[%s1 + $0x40] sm:$0xff]
  %v21 = vld [vmem:[%s1 + $0x48] sm:$0xff]
  %v22 = vld [vmem:[%s1 + $0x50] sm:$0xff]
  %v23 = vld [vmem:[%s1 + $0x58] sm:$0xff]
  %v24 = vld [vmem:[%s1 + $0x60] sm:$0xff]
  %v25 = vld [vmem:[%s1 + $0x68] sm:$0xff]
  %v26 = vld [vmem:[%s1 + $0x70] sm:$0xff]
  %v27 = vld [vmem:[%s1 + $0x78] sm:$0xff]
  %v28 = vld [vmem:[%s1 + $0x80] sm:$0xff]
  %v29 = vld [vmem:[%s1 + $0x88] sm:$0xff]
  %v30 = vld [vmem:[%s1 + $0x90] sm:$0xff]
  %v31 = vld [vmem:[%s1 + $0x98] sm:$0xff]
  %v32 = vld [vmem:[%s1 + $0xa0] sm:$0xff]
  %v33 = vld [vmem:[%s1 + $0xa8] sm:$0xff]
  %v34 = vld [vmem:[%s1 + $0xb0] sm:$0xff]
  %v35 = vld [vmem:[%s1 + $0xb8] sm:$0xff]
  %v36 = vld [vmem:[%s1 + $0xc0] sm:$0xff]
  %v37 = vld [vmem:[%s1 + $0xc8] sm:$0xff]
  %v38 = vld [vmem:[%s1 + $0xd0] sm:$0xff]
  %v39 = vld [vmem:[%s1 + $0xd8] sm:$0xff]
  %v40 = vld [vmem:[%s1 + $0xe0] sm:$0xff]
  %v41 = vld [vmem:[%s1 + $0xe8] sm:$0xff]
  %v42 = vld [vmem:[%s1 + $0xf0] sm:$0xff]
  %v43 = vld [vmem:[%s1 + $0xf8] sm:$0xff]
  %44 = vmatpush.msra.mxu0 %v42
  %45 = vmatpush.msra.mxu0 %v40
  %46 = vmatpush.msra.mxu0 %v38
  %47 = vmatpush.msra.mxu0 %v36
  %48 = vmatpush.msra.mxu0 %v34
  %49 = vmatpush.msra.mxu0 %v32
  %50 = vmatpush.msra.mxu0 %v30
  %51 = vmatpush.msra.mxu0 %v28
  %52 = vmatpush.msra.mxu0 %v26
  %53 = vmatpush.msra.mxu0 %v24
  %54 = vmatpush.msra.mxu0 %v22
  %55 = vmatpush.msra.mxu0 %v20
  %56 = vmatpush.msra.mxu0 %v18
  %57 = vmatpush.msra.mxu0 %v16
  %58 = vmatpush.msra.mxu0 %v14
  %59 = vmatpush.msra.mxu0 %v12
  %60 = vmatmul.f32.gmra.mxu0 %v11
  %v61 = vpop.f32.mrf.mxu0
  %v62 = vadd.f32 0.0, %v61
  %63 = vdwg.mxu0
  %64 = vmatpush.msra.mxu0 %v43
  %65 = vmatpush.msra.mxu0 %v41
  %66 = vmatpush.msra.mxu0 %v39
  %67 = vmatpush.msra.mxu0 %v37
  %68 = vmatpush.msra.mxu0 %v35
  %69 = vmatpush.msra.mxu0 %v33
  %70 = vmatpush.msra.mxu0 %v31
  %71 = vmatpush.msra.mxu0 %v29
  %72 = vmatpush.msra.mxu0 %v27
  %73 = vmatpush.msra.mxu0 %v25
  %74 = vmatpush.msra.mxu0 %v23
  %75 = vmatpush.msra.mxu0 %v21
  %76 = vmatpush.msra.mxu0 %v19
  %77 = vmatpush.msra.mxu0 %v17
  %78 = vmatpush.msra.mxu0 %v15
  %79 = vmatpush.msra.mxu0 %v13
  %80 = vmatmul.f32.gmra.mxu0 %v11
  %v81 = vpop.f32.mrf.mxu0
  %v82 = vadd.f32 0.0, %v81
  %83 = vdwg.mxu0
  %84 = vst [vmem:[%s2] sm:$0xff] %v62
  %85 = vst [vmem:[%s2 + $0x8] sm:$0xff] %v82
  // Predicated region
  $region10: #{entrywise_u.1} parent=0 // pred_check
    _
  $region11: #{entrywise_u.1} parent=0 // pred_check_branch
    %87 = sbr.rel (0) target = $region13
  $region12: #{entrywise_u.1} parent=0 // pred_region
    _
  $region13: #{entrywise_u.1} parent=0 // pred_fallthru
    _
  // Predicated region
  $region14: #{entrywise_u.1} parent=0 // pred_check
    _
  $region15: #{entrywise_u.1} parent=0 // pred_check_branch
    %89 = sbr.rel (0) target = $region17
  $region16: #{entrywise_u.1} parent=0 // pred_region
    _
  $region17: #{entrywise_u.1} parent=0 // pred_fallthru
    _

</llo_original>
